<compile_context>
chip_gen: v7x
topology: tpu7x:2x2x1
jax: 0.10.0
libtpu: 0.0.40
codegen_flags: <defaults>
</compile_context>

<pallas_src>
import math

import numpy as np
import jax
import jax.numpy as jnp
from jax import lax
from jax.experimental import pallas as pl
from jax.experimental.pallas import tpu as pltpu

N_QUBITS = 4                 # n_inputs of the Hybrid layer
DEPTH = 2                    # quantum circuit depth
D = 2 ** N_QUBITS            # statevector dimension (16)
SHIFT = math.pi / 2          # parameter-shift value (backward pass only)
LANE = 128                   # TPU lane width
OUT_ROWS = 8                 # N_QUBITS padded to a sublane-friendly 8


# ----------------------------------------------------------------------------
# Circuit building blocks (real RY / CNOT gates only -> real statevector).
# ----------------------------------------------------------------------------
def _ry(theta):
    """RY(theta) 2x2 real rotation, batched over leading dims."""
    c = jnp.cos(theta / 2.0)
    s = jnp.sin(theta / 2.0)
    row0 = jnp.stack([c, -s], axis=-1)
    row1 = jnp.stack([s, c], axis=-1)
    return jnp.stack([row0, row1], axis=-2)          # (..., 2, 2)


def _cnot_ring_matrix():
    """Permutation matrix of a CNOT ring (control q -> target (q+1) % n)."""
    # TODO(synk): exact entangler topology of QNNCircuitGenerator.genCircuit is
    # not available in the reference; a nearest-neighbour CNOT ring is assumed.
    perm = np.arange(D)
    for c in range(N_QUBITS):
        t = (c + 1) % N_QUBITS
        c_mask = 1 << (N_QUBITS - 1 - c)
        t_mask = 1 << (N_QUBITS - 1 - t)
        perm = np.where((perm & c_mask) != 0, perm ^ t_mask, perm)
    mat = np.zeros((D, D), dtype=np.float32)
    mat[perm, np.arange(D)] = 1.0                    # psi_new[perm[s]] = psi_old[s]
    return jnp.asarray(mat)


def _kron_ry(angles):
    """kron(RY(a_0), ..., RY(a_{n-1})) for a single angle vector (N_QUBITS,)."""
    mats = _ry(angles)                               # (N_QUBITS, 2, 2)
    u = mats[0]
    for q in range(1, N_QUBITS):
        u = jnp.kron(u, mats[q])
    return u                                         # (D, D)


def _variational_matrix(weights):
    """Pre-multiply all batch-independent variational layers into one (D, D)."""
    w = weights.reshape(DEPTH, N_QUBITS).astype(jnp.float32)
    cnot = _cnot_ring_matrix()
    m = jnp.eye(D, dtype=jnp.float32)
    for d in range(DEPTH):
        # variational layer = CNOT ring, then RY(weight) rotations
        m = (_kron_ry(w[d]) @ cnot) @ m
    return m                                         # (D, D)


def _sign_matrix_padded():
    """(OUT_ROWS, D) with row k (k < N_QUBITS): +1 if MSB-indexed bit k of the
    basis state is 1, else -1; rows >= N_QUBITS are zero padding."""
    s = np.arange(D)[None, :]
    k = np.arange(OUT_ROWS)[:, None]
    bits = (s >> np.maximum(N_QUBITS - 1 - k, 0)) & 1
    signs = (2 * bits - 1).astype(np.float32)
    signs[N_QUBITS:, :] = 0.0
    return jnp.asarray(signs)                        # (OUT_ROWS, D)


def _sign_matrix():
    """(D, N_QUBITS) sign matrix used by the pure-JAX reference."""
    s = np.arange(D)[:, None]
    k = np.arange(N_QUBITS)[None, :]
    bits = (s >> (N_QUBITS - 1 - k)) & 1
    return jnp.asarray((2 * bits - 1).astype(np.float32))


# ----------------------------------------------------------------------------
# Pallas kernel: analytic encoding + pre-multiplied variational unitary + <Z>.
# Layout: batch on the lane axis.
# ----------------------------------------------------------------------------
def hybrid_expectation_kernel(x_ref, m_ref, signs_ref, out_ref):
    """x_ref: (N_QUBITS, Bt) angles; m_ref: (D, D); signs_ref: (OUT_ROWS, D);
    out_ref: (OUT_ROWS, Bt)."""
    bt = x_ref.shape[1]
    half = x_ref[...] * 0.5                          # (N_QUBITS, Bt)
    c = jnp.cos(half)                                # EUP
    s = jnp.sin(half)

    # |psi_enc>[state, b] = prod_q (cos(x_q/2) if bit_q(state)==0 else sin(x_q/2))
    # with qubit 0 mapped to the MSB of the state index (matches
    # format(i, '0{n}b')[qubit] indexing in NNQuantumCircuit.run).
    state = lax.broadcasted_iota(jnp.int32, (D, 1), 0)       # (D, 1)
    psi = None
    for q in range(N_QUBITS):                                 # static, unrolled
        bit = (state >> (N_QUBITS - 1 - q)) & 1               # (D, 1)
        sel = jnp.broadcast_to(bit == 1, (D, bt))
        fac = jnp.where(sel,
                        jnp.broadcast_to(s[q:q + 1, :], (D, bt)),
                        jnp.broadcast_to(c[q:q + 1, :], (D, bt)))
        psi = fac if psi is None else psi * fac               # (D, Bt)

    # all variational layers collapsed into one real unitary -> MXU matmul
    psi = jnp.dot(m_ref[...], psi, preferred_element_type=jnp.float32)
    probs = psi * psi                                         # measurement probs

    # expectation[k] = P(qubit k = 1) - P(qubit k = 0): lane-dense MXU matmul
    out_ref[...] = jnp.dot(signs_ref[...], probs,
                           preferred_element_type=jnp.float32)


def hybrid_forward(x, weights, *, b_tile_max=512):
    """Forward pass of the Hybrid layer: (B, N_QUBITS) -> (B, N_QUBITS) float32."""
    b = x.shape[0]
    x = x.astype(jnp.float32)
    weights = weights.astype(jnp.float32)

    m = _variational_matrix(weights)                 # (D, D), batch independent
    signs_p = _sign_matrix_padded()                  # (OUT_ROWS, D)

    # batch on the lane axis, padded to a multiple of the lane tile
    b_pad = -(-b // LANE) * LANE
    b_tile = min(b_tile_max, b_pad)
    b_pad = -(-b_pad // b_tile) * b_tile
    x_t = jnp.zeros((N_QUBITS, b_pad), jnp.float32).at[:, :b].set(x.T)

    grid = (b_pad // b_tile,)
    flops = b_pad * (2 * D * D + 2 * OUT_ROWS * D + 6 * D)
    bytes_accessed = 4 * (N_QUBITS * b_pad + OUT_ROWS * b_pad + D * D + OUT_ROWS * D)

    out = pl.pallas_call(
        hybrid_expectation_kernel,
        out_shape=jax.ShapeDtypeStruct((OUT_ROWS, b_pad), jnp.float32),
        grid=grid,
        in_specs=[
            pl.BlockSpec((N_QUBITS, b_tile), lambda i: (0, i)),   # angles
            pl.BlockSpec((D, D), lambda i: (0, 0)),               # variational M
            pl.BlockSpec((OUT_ROWS, D), lambda i: (0, 0)),        # padded signs
        ],
        out_specs=pl.BlockSpec((OUT_ROWS, b_tile), lambda i: (0, i)),
        compiler_params=pltpu.CompilerParams(dimension_semantics=("parallel",)),
        cost_estimate=pl.CostEstimate(
            flops=int(flops),
            transcendentals=int(2 * N_QUBITS * b_pad),
            bytes_accessed=int(bytes_accessed)),
    )(x_t, m, signs_p)

    return out[:N_QUBITS, :b].T                      # (B, N_QUBITS)


# ----------------------------------------------------------------------------
# Pure-JAX reference (layer-by-layer statevector propagation, as in the old code).
# ----------------------------------------------------------------------------
def _kron_ry_layer(angles):
    """kron over qubits of per-sample RY rotations: (B, n) -> (B, D, D)."""
    b = angles.shape[0]
    mats = _ry(angles)                               # (B, n, 2, 2)
    u = mats[:, 0]
    dim = 2
    for q in range(1, N_QUBITS):
        u = jnp.einsum("bij,bkl->bikjl", u, mats[:, q]).reshape(b, dim * 2, dim * 2)
        dim *= 2
    return u


def build_layer_unitaries(x, weights):
    """Stack (L, B, D, D) real layer unitaries: encoding + DEPTH variational layers."""
    b = x.shape[0]
    cnot = _cnot_ring_matrix()
    layers = [_kron_ry_layer(x)]
    w = weights.reshape(DEPTH, N_QUBITS)
    for d in range(DEPTH):
        r = _kron_ry_layer(jnp.broadcast_to(w[d], (b, N_QUBITS)))
        layers.append(jnp.einsum("bij,jk->bik", r, cnot))
    return jnp.stack(layers, axis=0)                 # (1+DEPTH, B, D, D)


def hybrid_forward_ref(x, weights):
    u = build_layer_unitaries(x.astype(jnp.float32), weights.astype(jnp.float32))
    b = x.shape[0]
    psi = jnp.zeros((b, D), jnp.float32).at[:, 0].set(1.0)
    for l in range(1 + DEPTH):
        psi = jnp.einsum("bij,bj->bi", u[l], psi)
    probs = psi * psi
    return probs @ _sign_matrix()


# ----------------------------------------------------------------------------
# DressedQNN: classical pre/post Linear layers around the quantum layer.
# ----------------------------------------------------------------------------
def init_dressed_qnn_params(key, dimensions=16, pre=(8, N_QUBITS),
                            post=(N_QUBITS, 8), n_classes=3):
    assert pre[-1] == N_QUBITS and post[0] == N_QUBITS
    ks = jax.random.split(key, 8)

    def lin(k, fan_in, fan_out):
        kw, kb = jax.random.split(k)
        lim = 1.0 / math.sqrt(fan_in)
        w = jax.random.uniform(kw, (fan_out, fan_in), minval=-lim, maxval=lim,
                               dtype=jnp.float32)
        bias = jax.random.uniform(kb, (fan_out,), minval=-lim, maxval=lim,
                                  dtype=jnp.float32)
        return w, bias

    params = {
        "pre": [lin(ks[0], dimensions, pre[0]), lin(ks[1], pre[0], pre[1])],
        # weight_initialization='uniform': U(0, pi), size = n_inputs * depth
        "q_weights": jax.random.uniform(ks[2], (N_QUBITS * DEPTH,), minval=0.0,
                                        maxval=np.pi, dtype=jnp.float32),
        "post": [lin(ks[3], post[0], post[1]), lin(ks[4], post[1], n_classes)],
    }
    return params


def dressed_qnn_forward(x, params, hybrid_fn=hybrid_forward):
    w0, b0 = params["pre"][0]
    h = jax.nn.relu(x @ w0.T + b0)                   # F.relu only on first pre layer
    for w, bi in params["pre"][1:]:
        h = h @ w.T + bi
    q = hybrid_fn(h, params["q_weights"])            # Hybrid quantum layer
    z = q
    for w, bi in params["post"]:
        z = z @ w.T + bi
    return jax.nn.softmax(z, axis=1)


def dressed_qnn_forward_ref(x, params):
    return dressed_qnn_forward(x, params, hybrid_fn=hybrid_forward_ref)


if __name__ == "__main__":
    key = jax.random.PRNGKey(0)
    kx, kp, ka = jax.random.split(key, 3)

    batch, dimensions, n_classes = 8, 16, 3
    x = jax.random.uniform(kx, (batch, dimensions), minval=-1.0, maxval=1.0,
                           dtype=jnp.float32)
    params = init_dressed_qnn_params(kp, dimensions=dimensions,
                                     pre=(8, N_QUBITS), post=(N_QUBITS, 8),
                                     n_classes=n_classes)

    # 1) direct check of the Pallas hybrid (quantum) kernel
    angles = jax.random.uniform(ka, (batch, N_QUBITS), minval=0.0, maxval=np.pi,
                                dtype=jnp.float32)
    hyb = jax.block_until_ready(hybrid_forward(angles, params["q_weights"]))
    hyb_ref = hybrid_forward_ref(angles, params["q_weights"])
    assert hyb.shape == (batch, N_QUBITS) and hyb.dtype == jnp.float32
    assert bool(jnp.allclose(hyb, hyb_ref, atol=1e-5, rtol=1e-5)), \
        "hybrid kernel mismatch vs JAX reference"

    # 2) full DressedQNN forward (pre-proc + quantum + post-proc + softmax)
    out = jax.block_until_ready(jax.jit(dressed_qnn_forward)(x, params))
    ref = dressed_qnn_forward_ref(x, params)
    assert out.shape == (batch, n_classes) and out.dtype == jnp.float32
    assert bool(jnp.allclose(out, ref, atol=1e-5, rtol=1e-5)), \
        "DressedQNN forward mismatch vs JAX reference"

    print("KERNEL_OK")
</pallas_src>

<mosaic_0001>
module attributes {stable_mosaic.version = 11 : i64} {
  func.func @hybrid_expectation_kernel(%arg0: i32, %arg1: memref<4x128xf32, #tpu.memory_space<vmem>>, %arg2: memref<16x16xf32, #tpu.memory_space<vmem>>, %arg3: memref<8x16xf32, #tpu.memory_space<vmem>>, %arg4: memref<8x128xf32, #tpu.memory_space<vmem>>) attributes {dimension_semantics = [#tpu.dimension_semantics<parallel>], iteration_bounds = array<i64: 1>, scalar_prefetch = 0 : i64, scratch_operands = 0 : i64, tpu.core_type = #tpu.core_type<tc>, window_params = [{transform_indices = @transform_0, window_bounds = array<i64: 4, 128>}, {pipeline_mode = #tpu.pipeline_mode<synchronous>, transform_indices = @transform_1, window_bounds = array<i64: 16, 16>}, {pipeline_mode = #tpu.pipeline_mode<synchronous>, transform_indices = @transform_2, window_bounds = array<i64: 8, 16>}, {transform_indices = @transform_3, window_bounds = array<i64: 8, 128>}]} {
    %c0 = arith.constant 0 : index
    %c0_0 = arith.constant 0 : index
    %0 = vector.load %arg1[%c0, %c0_0] : memref<4x128xf32, #tpu.memory_space<vmem>>, vector<4x128xf32>
    %cst = arith.constant 5.000000e-01 : f32
    %1 = vector.broadcast %cst : f32 to vector<4x128xf32>
    %2 = arith.mulf %0, %1 : vector<4x128xf32>
    %3 = math.cos %2 : vector<4x128xf32>
    %4 = math.sin %2 : vector<4x128xf32>
    %5 = tpu.iota {dimensions = array<i32: 0>} : vector<16x1xi32>
    %c3_i32 = arith.constant 3 : i32
    %6 = vector.broadcast %c3_i32 : i32 to vector<16x1xi32>
    %7 = arith.shrsi %5, %6 : vector<16x1xi32>
    %c1_i32 = arith.constant 1 : i32
    %8 = vector.broadcast %c1_i32 : i32 to vector<16x1xi32>
    %9 = arith.andi %7, %8 : vector<16x1xi32>
    %c1_i32_1 = arith.constant 1 : i32
    %10 = vector.broadcast %c1_i32_1 : i32 to vector<16x1xi32>
    %11 = arith.cmpi eq, %9, %10 : vector<16x1xi32>
    %12 = vector.shape_cast %11 : vector<16x1xi1> to vector<16x1xi1>
    %13 = vector.broadcast %12 : vector<16x1xi1> to vector<16x128xi1>
    %14 = vector.extract_strided_slice %4 {offsets = [0, 0], sizes = [1, 128], strides = [1, 1]} : vector<4x128xf32> to vector<1x128xf32>
    %15 = vector.shape_cast %14 : vector<1x128xf32> to vector<1x128xf32>
    %16 = vector.broadcast %15 : vector<1x128xf32> to vector<16x128xf32>
    %17 = vector.extract_strided_slice %3 {offsets = [0, 0], sizes = [1, 128], strides = [1, 1]} : vector<4x128xf32> to vector<1x128xf32>
    %18 = vector.shape_cast %17 : vector<1x128xf32> to vector<1x128xf32>
    %19 = vector.broadcast %18 : vector<1x128xf32> to vector<16x128xf32>
    %20 = arith.select %13, %16, %19 : vector<16x128xi1>, vector<16x128xf32>
    %c2_i32 = arith.constant 2 : i32
    %21 = vector.broadcast %c2_i32 : i32 to vector<16x1xi32>
    %22 = arith.shrsi %5, %21 : vector<16x1xi32>
    %c1_i32_2 = arith.constant 1 : i32
    %23 = vector.broadcast %c1_i32_2 : i32 to vector<16x1xi32>
    %24 = arith.andi %22, %23 : vector<16x1xi32>
    %c1_i32_3 = arith.constant 1 : i32
    %25 = vector.broadcast %c1_i32_3 : i32 to vector<16x1xi32>
    %26 = arith.cmpi eq, %24, %25 : vector<16x1xi32>
    %27 = vector.shape_cast %26 : vector<16x1xi1> to vector<16x1xi1>
    %28 = vector.broadcast %27 : vector<16x1xi1> to vector<16x128xi1>
    %29 = vector.extract_strided_slice %4 {offsets = [1, 0], sizes = [1, 128], strides = [1, 1]} : vector<4x128xf32> to vector<1x128xf32>
    %30 = vector.shape_cast %29 : vector<1x128xf32> to vector<1x128xf32>
    %31 = vector.broadcast %30 : vector<1x128xf32> to vector<16x128xf32>
    %32 = vector.extract_strided_slice %3 {offsets = [1, 0], sizes = [1, 128], strides = [1, 1]} : vector<4x128xf32> to vector<1x128xf32>
    %33 = vector.shape_cast %32 : vector<1x128xf32> to vector<1x128xf32>
    %34 = vector.broadcast %33 : vector<1x128xf32> to vector<16x128xf32>
    %35 = arith.select %28, %31, %34 : vector<16x128xi1>, vector<16x128xf32>
    %36 = arith.mulf %20, %35 : vector<16x128xf32>
    %c1_i32_4 = arith.constant 1 : i32
    %37 = vector.broadcast %c1_i32_4 : i32 to vector<16x1xi32>
    %38 = arith.shrsi %5, %37 : vector<16x1xi32>
    %c1_i32_5 = arith.constant 1 : i32
    %39 = vector.broadcast %c1_i32_5 : i32 to vector<16x1xi32>
    %40 = arith.andi %38, %39 : vector<16x1xi32>
    %c1_i32_6 = arith.constant 1 : i32
    %41 = vector.broadcast %c1_i32_6 : i32 to vector<16x1xi32>
    %42 = arith.cmpi eq, %40, %41 : vector<16x1xi32>
    %43 = vector.shape_cast %42 : vector<16x1xi1> to vector<16x1xi1>
    %44 = vector.broadcast %43 : vector<16x1xi1> to vector<16x128xi1>
    %45 = vector.extract_strided_slice %4 {offsets = [2, 0], sizes = [1, 128], strides = [1, 1]} : vector<4x128xf32> to vector<1x128xf32>
    %46 = vector.shape_cast %45 : vector<1x128xf32> to vector<1x128xf32>
    %47 = vector.broadcast %46 : vector<1x128xf32> to vector<16x128xf32>
    %48 = vector.extract_strided_slice %3 {offsets = [2, 0], sizes = [1, 128], strides = [1, 1]} : vector<4x128xf32> to vector<1x128xf32>
    %49 = vector.shape_cast %48 : vector<1x128xf32> to vector<1x128xf32>
    %50 = vector.broadcast %49 : vector<1x128xf32> to vector<16x128xf32>
    %51 = arith.select %44, %47, %50 : vector<16x128xi1>, vector<16x128xf32>
    %52 = arith.mulf %36, %51 : vector<16x128xf32>
    %c0_i32 = arith.constant 0 : i32
    %53 = vector.broadcast %c0_i32 : i32 to vector<16x1xi32>
    %54 = arith.shrsi %5, %53 : vector<16x1xi32>
    %c1_i32_7 = arith.constant 1 : i32
    %55 = vector.broadcast %c1_i32_7 : i32 to vector<16x1xi32>
    %56 = arith.andi %54, %55 : vector<16x1xi32>
    %c1_i32_8 = arith.constant 1 : i32
    %57 = vector.broadcast %c1_i32_8 : i32 to vector<16x1xi32>
    %58 = arith.cmpi eq, %56, %57 : vector<16x1xi32>
    %59 = vector.shape_cast %58 : vector<16x1xi1> to vector<16x1xi1>
    %60 = vector.broadcast %59 : vector<16x1xi1> to vector<16x128xi1>
    %61 = vector.extract_strided_slice %4 {offsets = [3, 0], sizes = [1, 128], strides = [1, 1]} : vector<4x128xf32> to vector<1x128xf32>
    %62 = vector.shape_cast %61 : vector<1x128xf32> to vector<1x128xf32>
    %63 = vector.broadcast %62 : vector<1x128xf32> to vector<16x128xf32>
    %64 = vector.extract_strided_slice %3 {offsets = [3, 0], sizes = [1, 128], strides = [1, 1]} : vector<4x128xf32> to vector<1x128xf32>
    %65 = vector.shape_cast %64 : vector<1x128xf32> to vector<1x128xf32>
    %66 = vector.broadcast %65 : vector<1x128xf32> to vector<16x128xf32>
    %67 = arith.select %60, %63, %66 : vector<16x128xi1>, vector<16x128xf32>
    %68 = arith.mulf %52, %67 : vector<16x128xf32>
    %c0_9 = arith.constant 0 : index
    %c0_10 = arith.constant 0 : index
    %69 = vector.load %arg2[%c0_9, %c0_10] : memref<16x16xf32, #tpu.memory_space<vmem>>, vector<16x16xf32>
    %cst_11 = arith.constant dense<0.000000e+00> : vector<16x128xf32>
    %70 = tpu.matmul %69, %68, %cst_11 {dimension_numbers = #tpu.dot_dimension_numbers<[1], [0], [0], [1], [0, 0, 1, 1], [], []>} : vector<16x16xf32>, vector<16x128xf32>, vector<16x128xf32> -> vector<16x128xf32>
    %71 = arith.mulf %70, %70 : vector<16x128xf32>
    %c0_12 = arith.constant 0 : index
    %c0_13 = arith.constant 0 : index
    %72 = vector.load %arg3[%c0_12, %c0_13] : memref<8x16xf32, #tpu.memory_space<vmem>>, vector<8x16xf32>
    %cst_14 = arith.constant dense<0.000000e+00> : vector<8x128xf32>
    %73 = tpu.matmul %72, %71, %cst_14 {dimension_numbers = #tpu.dot_dimension_numbers<[1], [0], [0], [1], [0, 0, 1, 1], [], []>} : vector<8x16xf32>, vector<16x128xf32>, vector<8x128xf32> -> vector<8x128xf32>
    %c0_15 = arith.constant 0 : index
    %c0_16 = arith.constant 0 : index
    %74 = vector.load %arg4[%c0_15, %c0_16] : memref<8x128xf32, #tpu.memory_space<vmem>>, vector<8x128xf32>
    tpu.vector_store %arg4[%c0_15, %c0_16], %73 {strides = array<i32>} : memref<8x128xf32, #tpu.memory_space<vmem>>, vector<8x128xf32>,
    return
  }
  func.func @transform_0(%arg0: i32) -> (i32, i32) {
    %c0_i32 = arith.constant 0 : i32
    %c0_i32_0 = arith.constant 0 : i32
    return %c0_i32, %arg0 : i32, i32
  }
  func.func @transform_1(%arg0: i32) -> (i32, i32) {
    %c0_i32 = arith.constant 0 : i32
    %c0_i32_0 = arith.constant 0 : i32
    %c0_i32_1 = arith.constant 0 : i32
    return %c0_i32, %c0_i32_0 : i32, i32
  }
  func.func @transform_2(%arg0: i32) -> (i32, i32) {
    %c0_i32 = arith.constant 0 : i32
    %c0_i32_0 = arith.constant 0 : i32
    %c0_i32_1 = arith.constant 0 : i32
    return %c0_i32, %c0_i32_0 : i32, i32
  }
  func.func @transform_3(%arg0: i32) -> (i32, i32) {
    %c0_i32 = arith.constant 0 : i32
    %c0_i32_0 = arith.constant 0 : i32
    return %c0_i32, %arg0 : i32, i32
  }
}

</mosaic_0001>

<llo_original>
// kernel: tpu_custom_call.1
$region0: #{tpu_custom_call.1}
  #allocation0 [shape = 'u32[]', space=smem, size = 0x4, offset = 0x4, fixed_abs, tag = 'smem constant byte address 0x4 - core index']
  #allocation1 [shape = 'u32[144,128]{1,0:T(1,128)}', space=vmem, size = 0x12000, scoped, tag = 'internal scratch']
  %s0 = inlined_call_operand.hbm [shape: f32[4,128], index: 0, kind: input, shape index: {}]
  %s1 = inlined_call_operand.hbm [shape: f32[16,16], index: 1, kind: input, shape index: {}]
  %s2 = inlined_call_operand.hbm [shape: f32[8,16], index: 2, kind: input, shape index: {}]
  %s3 = inlined_call_operand.hbm [shape: f32[8,128], index: 3, kind: output, shape index: {}]
  %s4 = sld [smem:[#allocation0]]
  $region34: #{tpu_custom_call.1} parent=0
    _
  %s6 = ssub.s32 1, %s4
  %s7 = scalar_select 0, %s6, %s4
  $region1: #{tpu_custom_call.1} parent=0
    #allocation2 [shape = 'u8[2048]{0}', space=vmem, size = 0x800, scoped, tag = 'input window, operand 0, single buffered']
    #allocation3 [shape = 's32[1]{0}', space=sflag, size = 0x4, scoped, tag = 'scoped memory for tpu_custom_call.1']
    #allocation4 [shape = 's32[1]{0}', space=sflag, size = 0x4, scoped, tag = 'scoped memory for tpu_custom_call.1']
    #allocation5 [shape = 'u8[8192]{0}', space=vmem, size = 0x2000, scoped, tag = 'input window, operand 1, single buffered']
    #allocation6 [shape = 's32[1]{0}', space=sflag, size = 0x4, scoped, tag = 'scoped memory for tpu_custom_call.1']
    #allocation7 [shape = 'u8[4096]{0}', space=vmem, size = 0x1000, scoped, tag = 'input window, operand 2, single buffered']
    #allocation8 [shape = 'u8[4096]{0}', space=vmem, size = 0x1000, scoped, tag = 'output window, operand 0, single buffered']
    %8 = vsyncpa [#allocation3], 0
    %9 = vsyncpa [#allocation6], 0
    %10 = vsyncpa [#allocation4], 0
    // Predicated region
    $region2: #{tpu_custom_call.1} parent=1 // pred_check
      _
    $region3: #{tpu_custom_call.1} parent=1 // pred_check_branch
      %12 = sbr.rel (0) target = $region5
    $region4: #{tpu_custom_call.1} parent=1 // pred_region
      %s14 = ssub.s32 64, 64
      %15 = vsyncadd [#allocation3], %s14
      %s17 = sshll.u32 [#allocation2], 4
      %s18 = int_to_ptr.vmem [resolvable:$true] %s17
      %20 = dma.hbm_to_vmem [thread:$0]  %s0, 64, %s18, [#allocation3]
    $region5: #{tpu_custom_call.1} parent=1 // pred_fallthru
      _
    // Predicated region
    $region6: #{tpu_custom_call.1} parent=1 // pred_check
      _
    $region7: #{tpu_custom_call.1} parent=1 // pred_check_branch
      %22 = sbr.rel (0) target = $region9
    $region8: #{tpu_custom_call.1} parent=1 // pred_region
      %s24 = ssub.s32 256, 256
      %25 = vsyncadd [#allocation6], %s24
      %s26 = sshll.u32 [#allocation5], 4
      %s27 = int_to_ptr.vmem [resolvable:$true] %s26
      %32 = dma.hbm_to_vmem [thread:$0]  %s1, 256, %s27, [#allocation6], 128, 128, 8
    $region9: #{tpu_custom_call.1} parent=1 // pred_fallthru
      _
    // Predicated region
    $region10: #{tpu_custom_call.1} parent=1 // pred_check
      _
    $region11: #{tpu_custom_call.1} parent=1 // pred_check_branch
      %34 = sbr.rel (0) target = $region13
    $region12: #{tpu_custom_call.1} parent=1 // pred_region
      %s36 = ssub.s32 128, 128
      %37 = vsyncadd [#allocation6], %s36
      %s39 = sshll.u32 [#allocation7], 4
      %s40 = int_to_ptr.vmem [resolvable:$true] %s39
      %42 = dma.hbm_to_vmem [thread:$0]  %s2, 128, %s40, [#allocation6]
    $region13: #{tpu_custom_call.1} parent=1 // pred_fallthru
      _
    // Predicated region
    $region14: #{tpu_custom_call.1} parent=1 // pred_check
      _
    $region15: #{tpu_custom_call.1} parent=1 // pred_check_branch
      %44 = sbr.rel (0) target = $region17
    $region16: #{tpu_custom_call.1} parent=1 // pred_region
      %45 = dma.done [#allocation3], 64
    $region17: #{tpu_custom_call.1} parent=1 // pred_fallthru
      _
    // Predicated region
    $region18: #{tpu_custom_call.1} parent=1 // pred_check
      _
    $region19: #{tpu_custom_call.1} parent=1 // pred_check_branch
      %47 = sbr.rel (0) target = $region21
    $region20: #{tpu_custom_call.1} parent=1 // pred_region
      %48 = dma.done [#allocation6], 256
    $region21: #{tpu_custom_call.1} parent=1 // pred_fallthru
      _
    // Predicated region
    $region22: #{tpu_custom_call.1} parent=1 // pred_check
      _
    $region23: #{tpu_custom_call.1} parent=1 // pred_check_branch
      %50 = sbr.rel (0) target = $region25
    $region24: #{tpu_custom_call.1} parent=1 // pred_region
      %51 = dma.done [#allocation6], 128
    $region25: #{tpu_custom_call.1} parent=1 // pred_fallthru
      _
    %v52 = vld [vmem:[#allocation2] sm:$0xf]
    %v53 = vmul.f32 %v52, 0.5
    %v54 = vand.u32 2147483647, %v53
    %vm55 = vcmp.le.f32.partialorder %v54, 0.7853982
    %vm56 = vcmp.lt.s32.totalorder %v53, 0
    %v57 = vand.u32 %v53, 2139095040
    %v58 = vshrl.u32 %v57, 23
    %v59 = vsub.s32 %v58, 127
    %v60 = vand.u32 2147483647, %v53
    %v61 = vand.u32 %v60, 8388607
    %v62 = vor.u32 %v61, 8388608
    %v63 = vsub.s32 0, %v62
    %v64 = vadd.s32 %v59, 1
    %vm65 = vcmp.gt.s32.totalorder %v64, 0
    %v66 = vsel %vm65, %v64, 0
    %v67 = vshrl.u32 %v66, 5
    %v68 = vand.u32 %v66, 31
    %v69 = vsub.s32 32, %v68
    %v70 = vshrl.u32 683565275, %v69
    %v71 = vshll.u32 683565275, %v68
    %v72 = vshrl.u32 2475754826, %v69
    %v73 = vor.u32 %v71, %v72
    %v74 = vshll.u32 2475754826, %v68
    %v75 = vshrl.u32 2131351028, %v69
    %v76 = vor.u32 %v74, %v75
    %v77 = vshll.u32 2131351028, %v68
    %v78 = vshrl.u32 2102212464, %v69
    %v79 = vor.u32 %v77, %v78
    %v80 = vshll.u32 2102212464, %v68
    %v81 = vshrl.u32 920167782, %v69
    %v82 = vor.u32 %v80, %v81
    %v83 = vshll.u32 920167782, %v68
    %v84 = vshrl.u32 1326507024, %v69
    %v85 = vor.u32 %v83, %v84
    %vm86 = vcmp.lt.s32.totalorder %v67, 1
    %vm87 = vcmp.lt.s32.totalorder %v67, 2
    %vm88 = vcmp.lt.s32.totalorder %v67, 3
    %vm89 = vcmp.lt.s32.totalorder %v67, 4
    %v90 = vsel %vm86, %v70, %v73
    %v91 = vsel %vm89, %v79, 2102212464
    %v92 = vsel %vm88, %v76, %v91
    %v93 = vsel %vm87, %v90, %v92
    %v94 = vsel %vm86, %v73, %v76
    %v95 = vsel %vm89, %v82, 920167782
    %v96 = vsel %vm88, %v79, %v95
    %v97 = vsel %vm87, %v94, %v96
    %v98 = vsel %vm86, %v76, %v79
    %v99 = vsel %vm89, %v85, 1326507024
    %v100 = vsel %vm88, %v82, %v99
    %v101 = vsel %vm87, %v98, %v100
    %v102 = vshll.u32 %v62, 8
    %v103 = vmul.u32.u64.compose %v102, %v101
    %v104 = vextract.low.u32 %v103
    %v105 = vextract.high.u32 %v103
    %v106 = vmul.u32.u64.compose %v102, %v97
    %v107 = vextract.low.u32 %v106
    %v108 = vextract.high.u32 %v106
    %v109 = vmul.u32 %v102, %v93
    %v110 = vadd.s32 %v105, %v107
    %vm111 = vc.u32 %v105, %v107
    %v112 = vadd.s32 %v108, 1
    %v113 = vsel %vm111, %v112, %v108
    %v114 = vadd.s32 %v109, %v113
    %v115 = vadd.s32 %v114, 536870912
    %v116 = vshrl.u32 %v115, 30
    %v117 = vshll.u32 %v116, 30
    %v118 = vsub.s32 %v114, %v117
    %vm119 = vcmp.lt.s32.totalorder %v118, 0
    %v120 = vsub.s32 0, %v118
    %v121 = vsel %vm119, %v120, %v118
    %v122 = vclz %v121
    %v123 = vsub.s32 %v122, 2
    %vm124 = vcmp.gt.s32.totalorder 0, %v123
    %v125 = vsel %vm124, 0, %v123
    %v126 = vsub.s32 32, %v125
    %v127 = vshll.u32 %v118, %v125
    %v128 = vshrl.u32 %v110, %v126
    %v129 = vor.u32 %v127, %v128
    %v130 = vsub.s32 4294967266, %v125
    %v131 = vadd.s32 %v130, 127
    %v132 = vshll.u32 %v131, 23
    %v133 = vor.u32 4788187, %v132
    %v134 = vand.u32 2147483647, %v133
    %v136 = vcvt.s32.f32 %v129
    %v137 = vmul.f32 %v136, %v134
    %v138 = vxor.u32 %v137, 2147483648
    %v139 = vsel %vm56, %v138, %v137
    %v140 = vsub.s32 4, %v116
    %v141 = vsel %vm56, %v140, %v116
    %v142 = vsel %vm55, %v53, %v139
    %v143 = vsel %vm55, 0, %v141
    %v144 = vcosq.f32.pop %v142
    %v145 = vsinq.f32.pop %v142
    %vm146 = vweird.f32 %v53
    %v147 = vand.u32 %v143, 3
    %vm148 = vcmp.lt.s32.totalorder %v147, 2
    %vm149 = vcmp.eq.s32.totalorder %v147, 0
    %v150 = vxor.u32 %v145, 2147483648
    %v151 = vsel %vm149, %v144, %v150
    %vm152 = vcmp.eq.s32.totalorder %v147, 2
    %v153 = vxor.u32 %v144, 2147483648
    %v154 = vsel %vm152, %v153, %v145
    %v155 = vsel %vm148, %v151, %v154
    %v156 = vsel %vm146, nan, %v155
    %v157 = vand.u32 2147483647, %v53
    %vm158 = vcmp.le.f32.partialorder %v157, 0.7853982
    %vm159 = vcmp.lt.s32.totalorder %v53, 0
    %v160 = vand.u32 %v53, 2139095040
    %v161 = vshrl.u32 %v160, 23
    %v162 = vsub.s32 %v161, 127
    %v163 = vand.u32 2147483647, %v53
    %v164 = vand.u32 %v163, 8388607
    %v165 = vor.u32 %v164, 8388608
    %v166 = vsub.s32 0, %v165
    %v167 = vadd.s32 %v162, 1
    %vm168 = vcmp.gt.s32.totalorder %v167, 0
    %v169 = vsel %vm168, %v167, 0
    %v170 = vshrl.u32 %v169, 5
    %v171 = vand.u32 %v169, 31
    %v172 = vsub.s32 32, %v171
    %v173 = vshrl.u32 683565275, %v172
    %v174 = vshll.u32 683565275, %v171
    %v175 = vshrl.u32 2475754826, %v172
    %v176 = vor.u32 %v174, %v175
    %v177 = vshll.u32 2475754826, %v171
    %v178 = vshrl.u32 2131351028, %v172
    %v179 = vor.u32 %v177, %v178
    %v180 = vshll.u32 2131351028, %v171
    %v181 = vshrl.u32 2102212464, %v172
    %v182 = vor.u32 %v180, %v181
    %v183 = vshll.u32 2102212464, %v171
    %v184 = vshrl.u32 920167782, %v172
    %v185 = vor.u32 %v183, %v184
    %v186 = vshll.u32 920167782, %v171
    %v187 = vshrl.u32 1326507024, %v172
    %v188 = vor.u32 %v186, %v187
    %vm189 = vcmp.lt.s32.totalorder %v170, 1
    %vm190 = vcmp.lt.s32.totalorder %v170, 2
    %vm191 = vcmp.lt.s32.totalorder %v170, 3
    %vm192 = vcmp.lt.s32.totalorder %v170, 4
    %v193 = vsel %vm189, %v173, %v176
    %v194 = vsel %vm192, %v182, 2102212464
    %v195 = vsel %vm191, %v179, %v194
    %v196 = vsel %vm190, %v193, %v195
    %v197 = vsel %vm189, %v176, %v179
    %v198 = vsel %vm192, %v185, 920167782
    %v199 = vsel %vm191, %v182, %v198
    %v200 = vsel %vm190, %v197, %v199
    %v201 = vsel %vm189, %v179, %v182
    %v202 = vsel %vm192, %v188, 1326507024
    %v203 = vsel %vm191, %v185, %v202
    %v204 = vsel %vm190, %v201, %v203
    %v205 = vshll.u32 %v165, 8
    %v206 = vmul.u32.u64.compose %v205, %v204
    %v207 = vextract.low.u32 %v206
    %v208 = vextract.high.u32 %v206
    %v209 = vmul.u32.u64.compose %v205, %v200
    %v210 = vextract.low.u32 %v209
    %v211 = vextract.high.u32 %v209
    %v212 = vmul.u32 %v205, %v196
    %v213 = vadd.s32 %v208, %v210
    %vm214 = vc.u32 %v208, %v210
    %v215 = vadd.s32 %v211, 1
    %v216 = vsel %vm214, %v215, %v211
    %v217 = vadd.s32 %v212, %v216
    %v218 = vadd.s32 %v217, 536870912
    %v219 = vshrl.u32 %v218, 30
    %v220 = vshll.u32 %v219, 30
    %v221 = vsub.s32 %v217, %v220
    %vm222 = vcmp.lt.s32.totalorder %v221, 0
    %v223 = vsub.s32 0, %v221
    %v224 = vsel %vm222, %v223, %v221
    %v225 = vclz %v224
    %v226 = vsub.s32 %v225, 2
    %vm227 = vcmp.gt.s32.totalorder 0, %v226
    %v228 = vsel %vm227, 0, %v226
    %v229 = vsub.s32 32, %v228
    %v230 = vshll.u32 %v221, %v228
    %v231 = vshrl.u32 %v213, %v229
    %v232 = vor.u32 %v230, %v231
    %v233 = vsub.s32 4294967266, %v228
    %v234 = vadd.s32 %v233, 127
    %v235 = vshll.u32 %v234, 23
    %v236 = vor.u32 4788187, %v235
    %v237 = vand.u32 2147483647, %v236
    %v239 = vcvt.s32.f32 %v232
    %v240 = vmul.f32 %v239, %v237
    %v241 = vxor.u32 %v240, 2147483648
    %v242 = vsel %vm159, %v241, %v240
    %v243 = vsub.s32 4, %v219
    %v244 = vsel %vm159, %v243, %v219
    %v245 = vsel %vm158, %v53, %v242
    %v246 = vsel %vm158, 0, %v244
    %v247 = vcosq.f32.pop %v245
    %v248 = vsinq.f32.pop %v245
    %vm249 = vweird.f32 %v53
    %v250 = vadd.s32 %v246, 3
    %v251 = vand.u32 %v250, 3
    %vm252 = vcmp.lt.s32.totalorder %v251, 2
    %vm253 = vcmp.eq.s32.totalorder %v251, 0
    %v254 = vxor.u32 %v248, 2147483648
    %v255 = vsel %vm253, %v247, %v254
    %vm256 = vcmp.eq.s32.totalorder %v251, 2
    %v257 = vxor.u32 %v247, 2147483648
    %v258 = vsel %vm256, %v257, %v248
    %v259 = vsel %vm252, %v255, %v258
    %v260 = vsel %vm249, nan, %v259
    %v261 = vlaneseq
    %v262 = vshrl.u32 %v261, 7
    %v263 = vadd.s32 %v262, 8
    %v264 = vshra.s32 %v262, 3
    %v265 = vshra.s32 %v263, 3
    %v266 = vand.u32 %v264, 1
    %v267 = vand.u32 %v265, 1
    %vm268 = vcmp.eq.s32.totalorder %v266, 1
    %vm269 = vcmp.eq.s32.totalorder %v267, 1
    %v270 = vsel %vm268, 1, 0
    %v271 = vsel %vm269, 1, 0
    %vm272 = vcmp.eq.s32.totalorder %v270, 1
    %vm273 = vcmp.eq.s32.totalorder %v271, 1
    %v274 = vlaneseq
    %v275 = vshrl.u32 %v274, 7
    %v276 = vsub.s32 0, %v275
    %v277 = vrot.slane %v260, %v276
    %v278 = vlaneseq
    %v279 = vshrl.u32 %v278, 7
    %v280 = vsub.s32 0, %v279
    %v281 = vrot.slane %v156, %v280
    %v282 = vsel %vm272, %v277, %v281
    %v283 = vsel %vm273, %v277, %v281
    %v284 = vshra.s32 %v262, 2
    %v285 = vshra.s32 %v263, 2
    %v286 = vand.u32 %v284, 1
    %v287 = vand.u32 %v285, 1
    %vm288 = vcmp.eq.s32.totalorder %v286, 1
    %vm289 = vcmp.eq.s32.totalorder %v287, 1
    %v290 = vsel %vm288, 1, 0
    %v291 = vsel %vm289, 1, 0
    %vm292 = vcmp.eq.s32.totalorder %v290, 1
    %vm293 = vcmp.eq.s32.totalorder %v291, 1
    %v294 = vlaneseq
    %v295 = vshrl.u32 %v294, 7
    %v296 = vsub.s32 1, %v295
    %v297 = vrot.slane %v260, %v296
    %v298 = vlaneseq
    %v299 = vshrl.u32 %v298, 7
    %v300 = vsub.s32 1, %v299
    %v301 = vrot.slane %v156, %v300
    %v302 = vsel %vm292, %v297, %v301
    %v303 = vsel %vm293, %v297, %v301
    %v304 = vmul.f32 %v282, %v302
    %v305 = vmul.f32 %v283, %v303
    %v306 = vshra.s32 %v262, 1
    %v307 = vshra.s32 %v263, 1
    %v308 = vand.u32 %v306, 1
    %v309 = vand.u32 %v307, 1
    %vm310 = vcmp.eq.s32.totalorder %v308, 1
    %vm311 = vcmp.eq.s32.totalorder %v309, 1
    %v312 = vsel %vm310, 1, 0
    %v313 = vsel %vm311, 1, 0
    %vm314 = vcmp.eq.s32.totalorder %v312, 1
    %vm315 = vcmp.eq.s32.totalorder %v313, 1
    %v316 = vlaneseq
    %v317 = vshrl.u32 %v316, 7
    %v318 = vsub.s32 2, %v317
    %v319 = vrot.slane %v260, %v318
    %v320 = vlaneseq
    %v321 = vshrl.u32 %v320, 7
    %v322 = vsub.s32 2, %v321
    %v323 = vrot.slane %v156, %v322
    %v324 = vsel %vm314, %v319, %v323
    %v325 = vsel %vm315, %v319, %v323
    %v326 = vmul.f32 %v304, %v324
    %v327 = vmul.f32 %v305, %v325
    %v328 = vand.u32 %v262, 1
    %v329 = vand.u32 %v263, 1
    %vm330 = vcmp.eq.s32.totalorder %v328, 1
    %vm331 = vcmp.eq.s32.totalorder %v329, 1
    %v332 = vsel %vm330, 1, 0
    %v333 = vsel %vm331, 1, 0
    %vm334 = vcmp.eq.s32.totalorder %v332, 1
    %vm335 = vcmp.eq.s32.totalorder %v333, 1
    %v336 = vlaneseq
    %v337 = vshrl.u32 %v336, 7
    %v338 = vsub.s32 3, %v337
    %v339 = vrot.slane %v260, %v338
    %v340 = vlaneseq
    %v341 = vshrl.u32 %v340, 7
    %v342 = vsub.s32 3, %v341
    %v343 = vrot.slane %v156, %v342
    %v344 = vsel %vm334, %v339, %v343
    %v345 = vsel %vm335, %v339, %v343
    %v346 = vmul.f32 %v326, %v344
    %v347 = vmul.f32 %v327, %v345
    %v348 = vld [vmem:[#allocation5] sm:$0xff]
    %v349 = vld [vmem:[#allocation5 + $0x8] sm:$0xff]
    %vm350 = vcmask 130048
    %v352 = vsel %vm350, %v348, 0
    %v355 = vsel %vm350, %v349, 0
    %357 = vmatprep.subr.mxu0 0.0
    %358 = vmatpush1.msra.mxu0 %v346
    %359 = vmatprep.subr.mxu0 0.0
    %360 = vmatpush1.msra.mxu0 %v347
    %361 = vmatprep.subr.mxu0 0.0
    %362 = vmatpush1.msra.mxu0 0.0
    %363 = vmatprep.subr.mxu0 0.0
    %364 = vmatpush1.msra.mxu0 0.0
    %365 = vmatprep.subr.mxu0 0.0
    %366 = vmatpush1.msra.mxu0 0.0
    %367 = vmatprep.subr.mxu0 0.0
    %368 = vmatpush1.msra.mxu0 0.0
    %369 = vmatprep.subr.mxu0 0.0
    %370 = vmatpush1.msra.mxu0 0.0
    %371 = vmatprep.subr.mxu0 0.0
    %372 = vmatpush1.msra.mxu0 0.0
    %373 = vmatprep.subr.mxu0 0.0
    %374 = vmatpush1.msra.mxu0 0.0
    %375 = vmatprep.subr.mxu0 0.0
    %376 = vmatpush1.msra.mxu0 0.0
    %377 = vmatprep.subr.mxu0 0.0
    %378 = vmatpush1.msra.mxu0 0.0
    %379 = vmatprep.subr.mxu0 0.0
    %380 = vmatpush1.msra.mxu0 0.0
    %381 = vmatprep.subr.mxu0 0.0
    %382 = vmatpush1.msra.mxu0 0.0
    %383 = vmatprep.subr.mxu0 0.0
    %384 = vmatpush1.msra.mxu0 0.0
    %385 = vmatprep.subr.mxu0 0.0
    %386 = vmatpush1.msra.mxu0 0.0
    %387 = vmatprep.subr.mxu0 0.0
    %388 = vmatpush1.msra.mxu0 0.0
    %389 = vmatprep.subr.mxu0 0.0
    %390 = vmatpush1.msra.mxu0 0.0
    %391 = vmatprep.subr.mxu0 0.0
    %392 = vmatpush1.msra.mxu0 0.0
    %393 = vmatprep.subr.mxu0 0.0
    %394 = vmatpush1.msra.mxu0 0.0
    %395 = vmatprep.subr.mxu0 0.0
    %396 = vmatpush1.msra.mxu0 0.0
    %397 = vmatprep.subr.mxu0 0.0
    %398 = vmatpush1.msra.mxu0 0.0
    %399 = vmatprep.subr.mxu0 0.0
    %400 = vmatpush1.msra.mxu0 0.0
    %401 = vmatprep.subr.mxu0 0.0
    %402 = vmatpush1.msra.mxu0 0.0
    %403 = vmatprep.subr.mxu0 0.0
    %404 = vmatpush1.msra.mxu0 0.0
    %405 = vmatprep.subr.mxu0 0.0
    %406 = vmatpush1.msra.mxu0 0.0
    %407 = vmatprep.subr.mxu0 0.0
    %408 = vmatpush1.msra.mxu0 0.0
    %409 = vmatprep.subr.mxu0 0.0
    %410 = vmatpush1.msra.mxu0 0.0
    %411 = vmatprep.subr.mxu0 0.0
    %412 = vmatpush1.msra.mxu0 0.0
    %413 = vmatprep.subr.mxu0 0.0
    %414 = vmatpush1.msra.mxu0 0.0
    %415 = vmatprep.subr.mxu0 0.0
    %416 = vmatpush1.msra.mxu0 0.0
    %417 = vmatprep.subr.mxu0 0.0
    %418 = vmatpush1.msra.mxu0 0.0
    %419 = vmatprep.subr.mxu0 0.0
    %420 = vmatpush1.msra.mxu0 0.0
    %421 = vmatprep.mubr.f32.mxu0 0.0
    %422 = vmatmul.mubr.f32.gmra.mrb[0].mxu0 %v352
    %v423 = vpop.f32.mrb[0].mxu0
    %v424 = vadd.f32 0.0, %v423
    %v425 = vpop.f32.mrb[0].mxu0
    %426 = vmatprep.mubr.f32.mxu0 0.0
    %427 = vmatmul.mubr.f32.gmra.mrb[0].mxu0 %v355
    %v428 = vpop.f32.mrb[0].mxu0
    %v429 = vadd.f32 0.0, %v428
    %v430 = vpop.f32.mrb[0].mxu0
    %431 = vdwg.mxu0
    %v432 = vmul.f32 %v424, %v424
    %v433 = vmul.f32 %v429, %v429
    %v434 = vld [vmem:[#allocation7] sm:$0xff]
    %v436 = vsel %vm350, %v434, 0
    %438 = vmatprep.subr.mxu0 0.0
    %439 = vmatpush1.msra.mxu0 %v432
    %440 = vmatprep.subr.mxu0 0.0
    %441 = vmatpush1.msra.mxu0 %v433
    %442 = vmatprep.subr.mxu0 0.0
    %443 = vmatpush1.msra.mxu0 0.0
    %444 = vmatprep.subr.mxu0 0.0
    %445 = vmatpush1.msra.mxu0 0.0
    %446 = vmatprep.subr.mxu0 0.0
    %447 = vmatpush1.msra.mxu0 0.0
    %448 = vmatprep.subr.mxu0 0.0
    %449 = vmatpush1.msra.mxu0 0.0
    %450 = vmatprep.subr.mxu0 0.0
    %451 = vmatpush1.msra.mxu0 0.0
    %452 = vmatprep.subr.mxu0 0.0
    %453 = vmatpush1.msra.mxu0 0.0
    %454 = vmatprep.subr.mxu0 0.0
    %455 = vmatpush1.msra.mxu0 0.0
    %456 = vmatprep.subr.mxu0 0.0
    %457 = vmatpush1.msra.mxu0 0.0
    %458 = vmatprep.subr.mxu0 0.0
    %459 = vmatpush1.msra.mxu0 0.0
    %460 = vmatprep.subr.mxu0 0.0
    %461 = vmatpush1.msra.mxu0 0.0
    %462 = vmatprep.subr.mxu0 0.0
    %463 = vmatpush1.msra.mxu0 0.0
    %464 = vmatprep.subr.mxu0 0.0
    %465 = vmatpush1.msra.mxu0 0.0
    %466 = vmatprep.subr.mxu0 0.0
    %467 = vmatpush1.msra.mxu0 0.0
    %468 = vmatprep.subr.mxu0 0.0
    %469 = vmatpush1.msra.mxu0 0.0
    %470 = vmatprep.subr.mxu0 0.0
    %471 = vmatpush1.msra.mxu0 0.0
    %472 = vmatprep.subr.mxu0 0.0
    %473 = vmatpush1.msra.mxu0 0.0
    %474 = vmatprep.subr.mxu0 0.0
    %475 = vmatpush1.msra.mxu0 0.0
    %476 = vmatprep.subr.mxu0 0.0
    %477 = vmatpush1.msra.mxu0 0.0
    %478 = vmatprep.subr.mxu0 0.0
    %479 = vmatpush1.msra.mxu0 0.0
    %480 = vmatprep.subr.mxu0 0.0
    %481 = vmatpush1.msra.mxu0 0.0
    %482 = vmatprep.subr.mxu0 0.0
    %483 = vmatpush1.msra.mxu0 0.0
    %484 = vmatprep.subr.mxu0 0.0
    %485 = vmatpush1.msra.mxu0 0.0
    %486 = vmatprep.subr.mxu0 0.0
    %487 = vmatpush1.msra.mxu0 0.0
    %488 = vmatprep.subr.mxu0 0.0
    %489 = vmatpush1.msra.mxu0 0.0
    %490 = vmatprep.subr.mxu0 0.0
    %491 = vmatpush1.msra.mxu0 0.0
    %492 = vmatprep.subr.mxu0 0.0
    %493 = vmatpush1.msra.mxu0 0.0
    %494 = vmatprep.subr.mxu0 0.0
    %495 = vmatpush1.msra.mxu0 0.0
    %496 = vmatprep.subr.mxu0 0.0
    %497 = vmatpush1.msra.mxu0 0.0
    %498 = vmatprep.subr.mxu0 0.0
    %499 = vmatpush1.msra.mxu0 0.0
    %500 = vmatprep.subr.mxu0 0.0
    %501 = vmatpush1.msra.mxu0 0.0
    %502 = vmatprep.mubr.f32.mxu0 0.0
    %503 = vmatmul.mubr.f32.gmra.mrb[0].mxu0 %v436
    %v504 = vpop.f32.mrb[0].mxu0
    %v505 = vadd.f32 0.0, %v504
    %v506 = vpop.f32.mrb[0].mxu0
    %507 = vdwg.mxu0
    %508 = vst [vmem:[#allocation8] sm:$0xff] %v505
    // Predicated region
    $region26: #{tpu_custom_call.1} parent=1 // pred_check
      _
    $region27: #{tpu_custom_call.1} parent=1 // pred_check_branch
      %510 = sbr.rel (0) target = $region29
    $region28: #{tpu_custom_call.1} parent=1 // pred_region
      %s512 = ssub.s32 128, 128
      %513 = vsyncadd [#allocation4], %s512
      %s515 = sshll.u32 [#allocation8], 4
      %s516 = int_to_ptr.vmem [resolvable:$true] %s515
      %518 = dma.vmem_to_hbm [thread:$0]  %s516, 128, %s3, [#allocation4]
    $region29: #{tpu_custom_call.1} parent=1 // pred_fallthru
      _
    // Predicated region
    $region30: #{tpu_custom_call.1} parent=1 // pred_check
      _
    $region31: #{tpu_custom_call.1} parent=1 // pred_check_branch
      %520 = sbr.rel (0) target = $region33
    $region32: #{tpu_custom_call.1} parent=1 // pred_region
      %521 = dma.done [#allocation4], 128
    $region33: #{tpu_custom_call.1} parent=1 // pred_fallthru
      _
    %522 = vsyncpa [#allocation3], 1
    %523 = vsyncpa [#allocation6], 1
    %524 = vsyncpa [#allocation4], 1

</llo_original>
